<compile_context>
chip_gen: v7x
topology: tpu7x:2x2x1
jax: 0.10.0
libtpu: 0.0.40
codegen_flags: <defaults>
</compile_context>

<pallas_src>
import functools
import math

import jax
import jax.numpy as jnp
from jax import lax
from jax.experimental import pallas as pl
from jax.experimental.pallas import tpu as pltpu


_SQRT_2_OVER_PI = math.sqrt(2.0 / math.pi)
_INV_SQRT_2 = 1.0 / math.sqrt(2.0)


def _round_up(n, m):
    return ((n + m - 1) // m) * m


def _gelu(x, approximate):
    if approximate:
        # tanh form: the transcendental goes to the EUP slot (VALU-relieving).
        return 0.5 * x * (1.0 + jnp.tanh(_SQRT_2_OVER_PI * (x + 0.044715 * x * x * x)))
    # PyTorch F.gelu default (approximate='none'): 0.5*x*(1+erf(x/sqrt(2)))
    return 0.5 * x * (1.0 + lax.erf(x * _INV_SQRT_2))


def _mlp_encoder_kernel(x_ref, w1_ref, b1_ref, w2_ref, b2_ref, w3_ref, b3_ref,
                        o_ref, *, gelu_approximate):
    # Whole hot path on-chip: 3 MXU matmuls (f32 accumulation), f32 bias + GELU.
    md = w1_ref.dtype  # matmul operand dtype (bf16 fast path or f32)
    x = x_ref[...].astype(md)  # cast in-kernel; x arrives via DMA in its own dtype

    h = jnp.dot(x, w1_ref[...], preferred_element_type=jnp.float32)
    h = _gelu(h + b1_ref[...], gelu_approximate)

    h = jnp.dot(h.astype(md), w2_ref[...], preferred_element_type=jnp.float32)
    h = _gelu(h + b2_ref[...], gelu_approximate)

    out = jnp.dot(h.astype(md), w3_ref[...], preferred_element_type=jnp.float32)
    o_ref[...] = (out + b3_ref[...]).astype(o_ref.dtype)


@functools.partial(jax.jit, static_argnames=("tm", "matmul_dtype", "gelu_approximate"))
def mlp_encoder(x, w1, b1, w2, b2, w3, b3, *, tm=256,
                matmul_dtype=jnp.bfloat16, gelu_approximate=True):
    """x: [B, input_dim]; w_i: [in_i, out_i] (pre-transposed); b_i: [1, out_i].

    Returns [B, latent_dim] in x.dtype. Default path uses bf16 matmul operands
    with f32 accumulation and tanh-GELU; pass matmul_dtype=jnp.float32,
    gelu_approximate=False for strict F.gelu/f32 semantics.
    """
    B, D_in = x.shape
    H1 = w1.shape[1]
    H2 = w2.shape[1]
    D_lat = w3.shape[1]
    out_dtype = x.dtype
    md = jnp.dtype(matmul_dtype)

    # Batch tile: big by default, clamped to the (sublane-rounded) batch. The
    # grid uses cdiv so a ragged last block is masked by Pallas — no batch pad.
    tm_eff = max(8, min(tm, _round_up(B, 8)))
    grid = (pl.cdiv(B, tm_eff),)

    # Weights: cast to operand dtype (no-op if caller pre-cast them). Biases f32.
    w1c, w2c, w3c = w1.astype(md), w2.astype(md), w3.astype(md)
    b1f, b2f, b3f = (b.astype(jnp.float32) for b in (b1, b2, b3))

    # Weights/biases as single full-shape blocks, resident across the grid
    # (constant index map -> Pallas skips re-DMA between grid steps).
    def full(shape):
        return pl.BlockSpec(shape, lambda i, _n=len(shape): (0,) * _n)

    # Explicit VMEM budget: resident weights/biases + double-buffered x/out
    # tiles + f32 intermediates, with margin. Keeps v5e above its 16 MiB scoped
    # default and stays inside v7x's 64 MiB physical VMEM for small models.
    md_size = md.itemsize
    weight_bytes = (D_in * H1 + H1 * H2 + H2 * D_lat) * md_size
    bias_bytes = (H1 + H2 + D_lat) * 4
    io_tile_bytes = tm_eff * D_in * jnp.dtype(x.dtype).itemsize \
        + tm_eff * D_lat * jnp.dtype(out_dtype).itemsize
    h_bytes = 2 * tm_eff * max(H1, H2) * 4
    vmem_needed = 2 * (weight_bytes + bias_bytes + io_tile_bytes) + h_bytes + (4 << 20)
    vmem_limit = int(min(max(vmem_needed, 32 << 20), 100 << 20))

    flops = 2 * B * (D_in * H1 + H1 * H2 + H2 * D_lat)
    transcendentals = B * (H1 + H2)  # one tanh/erf per hidden activation
    bytes_accessed = (
        x.size * jnp.dtype(x.dtype).itemsize
        + (w1c.size + w2c.size + w3c.size) * md_size
        + (b1f.size + b2f.size + b3f.size) * 4
        + B * D_lat * jnp.dtype(out_dtype).itemsize
    )

    kernel = functools.partial(_mlp_encoder_kernel,
                               gelu_approximate=bool(gelu_approximate))

    return pl.pallas_call(
        kernel,
        out_shape=jax.ShapeDtypeStruct((B, D_lat), out_dtype),
        grid=grid,
        in_specs=[
            pl.BlockSpec((tm_eff, D_in), lambda i: (i, 0)),  # x tile over batch
            full((D_in, H1)), full((1, H1)),
            full((H1, H2)), full((1, H2)),
            full((H2, D_lat)), full((1, D_lat)),
        ],
        out_specs=pl.BlockSpec((tm_eff, D_lat), lambda i: (i, 0)),
        compiler_params=pltpu.CompilerParams(
            dimension_semantics=("parallel",),
            vmem_limit_bytes=vmem_limit,
        ),
        cost_estimate=pl.CostEstimate(
            flops=flops,
            transcendentals=transcendentals,
            bytes_accessed=bytes_accessed,
        ),
    )(x, w1c, b1f, w2c, b2f, w3c, b3f)


def init_linear_params(key, in_dim, out_dim, dtype=jnp.float32):
    """Deterministic init mimicking nn.Linear's kaiming-uniform / uniform bias."""
    kw, kb = jax.random.split(key)
    bound = 1.0 / math.sqrt(in_dim)
    # Store weight already transposed: [in_dim, out_dim]
    w = jax.random.uniform(kw, (in_dim, out_dim), dtype, minval=-bound, maxval=bound)
    b = jax.random.uniform(kb, (1, out_dim), dtype, minval=-bound, maxval=bound)
    return w, b


def reference_forward(x, w1, b1, w2, b2, w3, b3):
    # Module semantics: F.gelu default == exact erf GELU.
    h = jax.nn.gelu(x @ w1 + b1, approximate=False)
    h = jax.nn.gelu(h @ w2 + b2, approximate=False)
    return h @ w3 + b3


if __name__ == "__main__":
    # Shapes consistent with the module's config:
    #   input_dim=32, hidden_dim1=64, hidden_dim2=48, latent_dim=16
    B, D_IN, H1, H2, D_LAT = 8, 32, 64, 48, 16

    key = jax.random.PRNGKey(0)
    kx, k1, k2, k3, kx2 = jax.random.split(key, 5)

    x = jax.random.normal(kx, (B, D_IN), jnp.float32)
    w1, b1 = init_linear_params(k1, D_IN, H1)
    w2, b2 = init_linear_params(k2, H1, H2)
    w3, b3 = init_linear_params(k3, H2, D_LAT)

    ref = reference_forward(x, w1, b1, w2, b2, w3, b3)

    # 1) Strict path (f32 operands, exact erf GELU): tight check vs reference.
    out = mlp_encoder(x, w1, b1, w2, b2, w3, b3,
                      matmul_dtype=jnp.float32, gelu_approximate=False)
    out = jax.block_until_ready(out)
    assert out.shape == (B, D_LAT)
    assert jnp.allclose(out, ref, atol=1e-5, rtol=1e-5), "f32 mismatch vs reference"

    # 2) Default fast path (bf16 operands + tanh GELU) with a non-divisible
    #    batch to exercise the ragged/masked last block; weights pre-cast to
    #    bf16 once on the host (hoisted out of the per-call path).
    B2 = 300
    x2 = jax.random.normal(kx2, (B2, D_IN), jnp.float32)
    w1b, w2b, w3b = (w.astype(jnp.bfloat16) for w in (w1, w2, w3))
    out2 = mlp_encoder(x2, w1b, b1, w2b, b2, w3b, b3, tm=256)
    out2 = jax.block_until_ready(out2)
    ref2 = reference_forward(x2, w1, b1, w2, b2, w3, b3)
    assert out2.shape == (B2, D_LAT)
    assert jnp.allclose(out2, ref2, atol=5e-2, rtol=5e-2), "bf16 mismatch vs reference"

    print("KERNEL_OK")
</pallas_src>

<mosaic_0001>
module attributes {stable_mosaic.version = 11 : i64} {
  func.func @_mlp_encoder_kernel(%arg0: i32, %arg1: memref<8x32xf32, #tpu.memory_space<vmem>>, %arg2: memref<32x64xf32, #tpu.memory_space<vmem>>, %arg3: memref<1x64xf32, #tpu.memory_space<vmem>>, %arg4: memref<64x48xf32, #tpu.memory_space<vmem>>, %arg5: memref<1x48xf32, #tpu.memory_space<vmem>>, %arg6: memref<48x16xf32, #tpu.memory_space<vmem>>, %arg7: memref<1x16xf32, #tpu.memory_space<vmem>>, %arg8: memref<8x16xf32, #tpu.memory_space<vmem>>) attributes {dimension_semantics = [#tpu.dimension_semantics<parallel>], iteration_bounds = array<i64: 1>, scalar_prefetch = 0 : i64, scratch_operands = 0 : i64, tpu.core_type = #tpu.core_type<tc>, window_params = [{transform_indices = @transform_0, window_bounds = array<i64: 8, 32>}, {pipeline_mode = #tpu.pipeline_mode<synchronous>, transform_indices = @transform_1, window_bounds = array<i64: 32, 64>}, {pipeline_mode = #tpu.pipeline_mode<synchronous>, transform_indices = @transform_2, window_bounds = array<i64: 1, 64>}, {pipeline_mode = #tpu.pipeline_mode<synchronous>, transform_indices = @transform_3, window_bounds = array<i64: 64, 48>}, {pipeline_mode = #tpu.pipeline_mode<synchronous>, transform_indices = @transform_4, window_bounds = array<i64: 1, 48>}, {pipeline_mode = #tpu.pipeline_mode<synchronous>, transform_indices = @transform_5, window_bounds = array<i64: 48, 16>}, {pipeline_mode = #tpu.pipeline_mode<synchronous>, transform_indices = @transform_6, window_bounds = array<i64: 1, 16>}, {transform_indices = @transform_7, window_bounds = array<i64: 8, 16>}]} {
    %c0 = arith.constant 0 : index
    %c0_0 = arith.constant 0 : index
    %0 = vector.load %arg1[%c0, %c0_0] : memref<8x32xf32, #tpu.memory_space<vmem>>, vector<8x32xf32>
    %c0_1 = arith.constant 0 : index
    %c0_2 = arith.constant 0 : index
    %1 = vector.load %arg2[%c0_1, %c0_2] : memref<32x64xf32, #tpu.memory_space<vmem>>, vector<32x64xf32>
    %cst = arith.constant dense<0.000000e+00> : vector<8x64xf32>
    %2 = tpu.matmul %0, %1, %cst {dimension_numbers = #tpu.dot_dimension_numbers<[1], [0], [0], [1], [0, 0, 1, 1], [], []>} : vector<8x32xf32>, vector<32x64xf32>, vector<8x64xf32> -> vector<8x64xf32>
    %c0_3 = arith.constant 0 : index
    %c0_4 = arith.constant 0 : index
    %3 = vector.load %arg3[%c0_3, %c0_4] : memref<1x64xf32, #tpu.memory_space<vmem>>, vector<1x64xf32>
    %4 = vector.broadcast %3 : vector<1x64xf32> to vector<8x64xf32>
    %5 = arith.addf %2, %4 : vector<8x64xf32>
    %cst_5 = arith.constant 5.000000e-01 : f32
    %6 = vector.broadcast %cst_5 : f32 to vector<8x64xf32>
    %7 = arith.mulf %6, %5 : vector<8x64xf32>
    %cst_6 = arith.constant 0.707106769 : f32
    %8 = vector.broadcast %cst_6 : f32 to vector<8x64xf32>
    %9 = arith.mulf %5, %8 : vector<8x64xf32>
    %10 = math.erf %9 : vector<8x64xf32>
    %cst_7 = arith.constant 1.000000e+00 : f32
    %11 = vector.broadcast %cst_7 : f32 to vector<8x64xf32>
    %12 = arith.addf %11, %10 : vector<8x64xf32>
    %13 = arith.mulf %7, %12 : vector<8x64xf32>
    %c0_8 = arith.constant 0 : index
    %c0_9 = arith.constant 0 : index
    %14 = vector.load %arg4[%c0_8, %c0_9] : memref<64x48xf32, #tpu.memory_space<vmem>>, vector<64x48xf32>
    %cst_10 = arith.constant dense<0.000000e+00> : vector<8x48xf32>
    %15 = tpu.matmul %13, %14, %cst_10 {dimension_numbers = #tpu.dot_dimension_numbers<[1], [0], [0], [1], [0, 0, 1, 1], [], []>} : vector<8x64xf32>, vector<64x48xf32>, vector<8x48xf32> -> vector<8x48xf32>
    %c0_11 = arith.constant 0 : index
    %c0_12 = arith.constant 0 : index
    %16 = vector.load %arg5[%c0_11, %c0_12] : memref<1x48xf32, #tpu.memory_space<vmem>>, vector<1x48xf32>
    %17 = vector.broadcast %16 : vector<1x48xf32> to vector<8x48xf32>
    %18 = arith.addf %15, %17 : vector<8x48xf32>
    %cst_13 = arith.constant 5.000000e-01 : f32
    %19 = vector.broadcast %cst_13 : f32 to vector<8x48xf32>
    %20 = arith.mulf %19, %18 : vector<8x48xf32>
    %cst_14 = arith.constant 0.707106769 : f32
    %21 = vector.broadcast %cst_14 : f32 to vector<8x48xf32>
    %22 = arith.mulf %18, %21 : vector<8x48xf32>
    %23 = math.erf %22 : vector<8x48xf32>
    %cst_15 = arith.constant 1.000000e+00 : f32
    %24 = vector.broadcast %cst_15 : f32 to vector<8x48xf32>
    %25 = arith.addf %24, %23 : vector<8x48xf32>
    %26 = arith.mulf %20, %25 : vector<8x48xf32>
    %c0_16 = arith.constant 0 : index
    %c0_17 = arith.constant 0 : index
    %27 = vector.load %arg6[%c0_16, %c0_17] : memref<48x16xf32, #tpu.memory_space<vmem>>, vector<48x16xf32>
    %cst_18 = arith.constant dense<0.000000e+00> : vector<8x16xf32>
    %28 = tpu.matmul %26, %27, %cst_18 {dimension_numbers = #tpu.dot_dimension_numbers<[1], [0], [0], [1], [0, 0, 1, 1], [], []>} : vector<8x48xf32>, vector<48x16xf32>, vector<8x16xf32> -> vector<8x16xf32>
    %c0_19 = arith.constant 0 : index
    %c0_20 = arith.constant 0 : index
    %29 = vector.load %arg7[%c0_19, %c0_20] : memref<1x16xf32, #tpu.memory_space<vmem>>, vector<1x16xf32>
    %30 = vector.broadcast %29 : vector<1x16xf32> to vector<8x16xf32>
    %31 = arith.addf %28, %30 : vector<8x16xf32>
    %c0_21 = arith.constant 0 : index
    %c0_22 = arith.constant 0 : index
    %32 = vector.load %arg8[%c0_21, %c0_22] : memref<8x16xf32, #tpu.memory_space<vmem>>, vector<8x16xf32>
    tpu.vector_store %arg8[%c0_21, %c0_22], %31 {strides = array<i32>} : memref<8x16xf32, #tpu.memory_space<vmem>>, vector<8x16xf32>,
    return
  }
  func.func @transform_0(%arg0: i32) -> (i32, i32) {
    %c0_i32 = arith.constant 0 : i32
    %c0_i32_0 = arith.constant 0 : i32
    return %arg0, %c0_i32 : i32, i32
  }
  func.func @transform_1(%arg0: i32) -> (i32, i32) {
    %c0_i32 = arith.constant 0 : i32
    %c0_i32_0 = arith.constant 0 : i32
    %c0_i32_1 = arith.constant 0 : i32
    return %c0_i32, %c0_i32_0 : i32, i32
  }
  func.func @transform_2(%arg0: i32) -> (i32, i32) {
    %c0_i32 = arith.constant 0 : i32
    %c0_i32_0 = arith.constant 0 : i32
    %c0_i32_1 = arith.constant 0 : i32
    return %c0_i32, %c0_i32_0 : i32, i32
  }
  func.func @transform_3(%arg0: i32) -> (i32, i32) {
    %c0_i32 = arith.constant 0 : i32
    %c0_i32_0 = arith.constant 0 : i32
    %c0_i32_1 = arith.constant 0 : i32
    return %c0_i32, %c0_i32_0 : i32, i32
  }
  func.func @transform_4(%arg0: i32) -> (i32, i32) {
    %c0_i32 = arith.constant 0 : i32
    %c0_i32_0 = arith.constant 0 : i32
    %c0_i32_1 = arith.constant 0 : i32
    return %c0_i32, %c0_i32_0 : i32, i32
  }
  func.func @transform_5(%arg0: i32) -> (i32, i32) {
    %c0_i32 = arith.constant 0 : i32
    %c0_i32_0 = arith.constant 0 : i32
    %c0_i32_1 = arith.constant 0 : i32
    return %c0_i32, %c0_i32_0 : i32, i32
  }
  func.func @transform_6(%arg0: i32) -> (i32, i32) {
    %c0_i32 = arith.constant 0 : i32
    %c0_i32_0 = arith.constant 0 : i32
    %c0_i32_1 = arith.constant 0 : i32
    return %c0_i32, %c0_i32_0 : i32, i32
  }
  func.func @transform_7(%arg0: i32) -> (i32, i32) {
    %c0_i32 = arith.constant 0 : i32
    %c0_i32_0 = arith.constant 0 : i32
    return %arg0, %c0_i32 : i32, i32
  }
}

</mosaic_0001>

<llo_original>
// kernel: mlp_encoder.1
$region0: #{mlp_encoder.1}
  #allocation0 [shape = 'u32[]', space=smem, size = 0x4, offset = 0x4, fixed_abs, tag = 'smem constant byte address 0x4 - core index']
  #allocation1 [shape = 'u32[144,128]{1,0:T(1,128)}', space=vmem, size = 0x12000, scoped, tag = 'internal scratch']
  %s0 = inlined_call_operand.vmem [shape: f32[8,32], index: 0, kind: input, shape index: {}]
  %s1 = inlined_call_operand.vmem [shape: f32[32,64], index: 1, kind: input, shape index: {}]
  %s2 = inlined_call_operand.vmem [shape: f32[1,64], index: 2, kind: input, shape index: {}]
  %s3 = inlined_call_operand.vmem [shape: f32[64,48], index: 3, kind: input, shape index: {}]
  %s4 = inlined_call_operand.vmem [shape: f32[1,48], index: 4, kind: input, shape index: {}]
  %s5 = inlined_call_operand.vmem [shape: f32[48,16], index: 5, kind: input, shape index: {}]
  %s6 = inlined_call_operand.vmem [shape: f32[1,16], index: 6, kind: input, shape index: {}]
  %s7 = inlined_call_operand.hbm [shape: f32[8,16], index: 7, kind: output, shape index: {}]
  %s8 = sld [smem:[#allocation0]]
  $region38: #{mlp_encoder.1} parent=0
    _
  %s10 = ssub.s32 1, %s8
  %s11 = scalar_select 0, %s10, %s8
  $region1: #{mlp_encoder.1} parent=0
    #allocation2 [shape = 'u8[4096]{0}', space=vmem, size = 0x1000, scoped, tag = 'output window, operand 0, single buffered']
    #allocation3 [shape = 's32[1]{0}', space=sflag, size = 0x4, scoped, tag = 'scoped memory for mlp_encoder.1']
    %12 = vsyncpa [#allocation3], 0
    // Predicated region
    $region2: #{mlp_encoder.1} parent=1 // pred_check
      _
    $region3: #{mlp_encoder.1} parent=1 // pred_check_branch
      %14 = sbr.rel (0) target = $region5
    $region4: #{mlp_encoder.1} parent=1 // pred_region
      _
    $region5: #{mlp_encoder.1} parent=1 // pred_fallthru
      _
    // Predicated region
    $region6: #{mlp_encoder.1} parent=1 // pred_check
      _
    $region7: #{mlp_encoder.1} parent=1 // pred_check_branch
      %16 = sbr.rel (0) target = $region9
    $region8: #{mlp_encoder.1} parent=1 // pred_region
      _
    $region9: #{mlp_encoder.1} parent=1 // pred_fallthru
      _
    // Predicated region
    $region10: #{mlp_encoder.1} parent=1 // pred_check
      _
    $region11: #{mlp_encoder.1} parent=1 // pred_check_branch
      %18 = sbr.rel (0) target = $region13
    $region12: #{mlp_encoder.1} parent=1 // pred_region
      _
    $region13: #{mlp_encoder.1} parent=1 // pred_fallthru
      _
    // Predicated region
    $region14: #{mlp_encoder.1} parent=1 // pred_check
      _
    $region15: #{mlp_encoder.1} parent=1 // pred_check_branch
      %20 = sbr.rel (0) target = $region17
    $region16: #{mlp_encoder.1} parent=1 // pred_region
      _
    $region17: #{mlp_encoder.1} parent=1 // pred_fallthru
      _
    // Predicated region
    $region18: #{mlp_encoder.1} parent=1 // pred_check
      _
    $region19: #{mlp_encoder.1} parent=1 // pred_check_branch
      %22 = sbr.rel (0) target = $region21
    $region20: #{mlp_encoder.1} parent=1 // pred_region
      _
    $region21: #{mlp_encoder.1} parent=1 // pred_fallthru
      _
    // Predicated region
    $region22: #{mlp_encoder.1} parent=1 // pred_check
      _
    $region23: #{mlp_encoder.1} parent=1 // pred_check_branch
      %24 = sbr.rel (0) target = $region25
    $region24: #{mlp_encoder.1} parent=1 // pred_region
      _
    $region25: #{mlp_encoder.1} parent=1 // pred_fallthru
      _
    // Predicated region
    $region26: #{mlp_encoder.1} parent=1 // pred_check
      _
    $region27: #{mlp_encoder.1} parent=1 // pred_check_branch
      %26 = sbr.rel (0) target = $region29
    $region28: #{mlp_encoder.1} parent=1 // pred_region
      _
    $region29: #{mlp_encoder.1} parent=1 // pred_fallthru
      _
    %v27 = vld [vmem:[%s0] sm:$0xff]
    %v28 = vld [vmem:[%s1] sm:$0xff]
    %v29 = vld [vmem:[%s1 + $0x8] sm:$0xff]
    %v30 = vld [vmem:[%s1 + $0x10] sm:$0xff]
    %v31 = vld [vmem:[%s1 + $0x18] sm:$0xff]
    %v32 = vld [vmem:[%s2] sm:$0x1]
    %v34 = vlaneseq
    %v35 = vshrl.u32 %v34, 7
    %v36 = vsub.s32 0, %v35
    %v37 = vrot.slane %v32, %v36
    %vm39 = vcmask 261120
    %v41 = vsel %vm39, %v27, 0
    %43 = vmatprep.subr.mxu0 0.0
    %44 = vmatpush1.msra.mxu0 %v28
    %45 = vmatprep.subr.mxu0 0.0
    %46 = vmatpush1.msra.mxu0 %v29
    %47 = vmatprep.subr.mxu0 0.0
    %48 = vmatpush1.msra.mxu0 %v30
    %49 = vmatprep.subr.mxu0 0.0
    %50 = vmatpush1.msra.mxu0 %v31
    %51 = vmatprep.subr.mxu0 0.0
    %52 = vmatpush1.msra.mxu0 0.0
    %53 = vmatprep.subr.mxu0 0.0
    %54 = vmatpush1.msra.mxu0 0.0
    %55 = vmatprep.subr.mxu0 0.0
    %56 = vmatpush1.msra.mxu0 0.0
    %57 = vmatprep.subr.mxu0 0.0
    %58 = vmatpush1.msra.mxu0 0.0
    %59 = vmatprep.subr.mxu0 0.0
    %60 = vmatpush1.msra.mxu0 0.0
    %61 = vmatprep.subr.mxu0 0.0
    %62 = vmatpush1.msra.mxu0 0.0
    %63 = vmatprep.subr.mxu0 0.0
    %64 = vmatpush1.msra.mxu0 0.0
    %65 = vmatprep.subr.mxu0 0.0
    %66 = vmatpush1.msra.mxu0 0.0
    %67 = vmatprep.subr.mxu0 0.0
    %68 = vmatpush1.msra.mxu0 0.0
    %69 = vmatprep.subr.mxu0 0.0
    %70 = vmatpush1.msra.mxu0 0.0
    %71 = vmatprep.subr.mxu0 0.0
    %72 = vmatpush1.msra.mxu0 0.0
    %73 = vmatprep.subr.mxu0 0.0
    %74 = vmatpush1.msra.mxu0 0.0
    %75 = vmatprep.subr.mxu0 0.0
    %76 = vmatpush1.msra.mxu0 0.0
    %77 = vmatprep.subr.mxu0 0.0
    %78 = vmatpush1.msra.mxu0 0.0
    %79 = vmatprep.subr.mxu0 0.0
    %80 = vmatpush1.msra.mxu0 0.0
    %81 = vmatprep.subr.mxu0 0.0
    %82 = vmatpush1.msra.mxu0 0.0
    %83 = vmatprep.subr.mxu0 0.0
    %84 = vmatpush1.msra.mxu0 0.0
    %85 = vmatprep.subr.mxu0 0.0
    %86 = vmatpush1.msra.mxu0 0.0
    %87 = vmatprep.subr.mxu0 0.0
    %88 = vmatpush1.msra.mxu0 0.0
    %89 = vmatprep.subr.mxu0 0.0
    %90 = vmatpush1.msra.mxu0 0.0
    %91 = vmatprep.subr.mxu0 0.0
    %92 = vmatpush1.msra.mxu0 0.0
    %93 = vmatprep.subr.mxu0 0.0
    %94 = vmatpush1.msra.mxu0 0.0
    %95 = vmatprep.subr.mxu0 0.0
    %96 = vmatpush1.msra.mxu0 0.0
    %97 = vmatprep.subr.mxu0 0.0
    %98 = vmatpush1.msra.mxu0 0.0
    %99 = vmatprep.subr.mxu0 0.0
    %100 = vmatpush1.msra.mxu0 0.0
    %101 = vmatprep.subr.mxu0 0.0
    %102 = vmatpush1.msra.mxu0 0.0
    %103 = vmatprep.subr.mxu0 0.0
    %104 = vmatpush1.msra.mxu0 0.0
    %105 = vmatprep.subr.mxu0 0.0
    %106 = vmatpush1.msra.mxu0 0.0
    %107 = vmatprep.mubr.f32.mxu0 0.0
    %108 = vmatmul.mubr.f32.gmra.mrb[0].mxu0 %v41
    %v109 = vpop.f32.mrb[0].mxu0
    %v110 = vadd.f32 %v37, %v109
    %v111 = vpop.f32.mrb[0].mxu0
    %112 = vdwg.mxu0
    %v113 = vmul.f32 %v110, 0.5
    %v114 = vmul.f32 %v110, 0.70710677
    %v115 = verf.f32.pop %v114
    %v116 = vadd.f32 %v115, 1.0
    %v117 = vmul.f32 %v113, %v116
    %v118 = vld [vmem:[%s3] sm:$0xff]
    %v119 = vld [vmem:[%s3 + $0x8] sm:$0xff]
    %v120 = vld [vmem:[%s3 + $0x10] sm:$0xff]
    %v121 = vld [vmem:[%s3 + $0x18] sm:$0xff]
    %v122 = vld [vmem:[%s3 + $0x20] sm:$0xff]
    %v123 = vld [vmem:[%s3 + $0x28] sm:$0xff]
    %v124 = vld [vmem:[%s3 + $0x30] sm:$0xff]
    %v125 = vld [vmem:[%s3 + $0x38] sm:$0xff]
    %v126 = vld [vmem:[%s4] sm:$0x1]
    %v128 = vlaneseq
    %v129 = vshrl.u32 %v128, 7
    %v130 = vsub.s32 0, %v129
    %v131 = vrot.slane %v126, %v130
    %vm133 = vcmask 523264
    %v135 = vsel %vm133, %v117, 0
    %137 = vmatprep.subr.mxu0 0.0
    %138 = vmatpush1.msra.mxu0 %v118
    %139 = vmatprep.subr.mxu0 0.0
    %140 = vmatpush1.msra.mxu0 %v119
    %141 = vmatprep.subr.mxu0 0.0
    %142 = vmatpush1.msra.mxu0 %v120
    %143 = vmatprep.subr.mxu0 0.0
    %144 = vmatpush1.msra.mxu0 %v121
    %145 = vmatprep.subr.mxu0 0.0
    %146 = vmatpush1.msra.mxu0 %v122
    %147 = vmatprep.subr.mxu0 0.0
    %148 = vmatpush1.msra.mxu0 %v123
    %149 = vmatprep.subr.mxu0 0.0
    %150 = vmatpush1.msra.mxu0 %v124
    %151 = vmatprep.subr.mxu0 0.0
    %152 = vmatpush1.msra.mxu0 %v125
    %153 = vmatprep.subr.mxu0 0.0
    %154 = vmatpush1.msra.mxu0 0.0
    %155 = vmatprep.subr.mxu0 0.0
    %156 = vmatpush1.msra.mxu0 0.0
    %157 = vmatprep.subr.mxu0 0.0
    %158 = vmatpush1.msra.mxu0 0.0
    %159 = vmatprep.subr.mxu0 0.0
    %160 = vmatpush1.msra.mxu0 0.0
    %161 = vmatprep.subr.mxu0 0.0
    %162 = vmatpush1.msra.mxu0 0.0
    %163 = vmatprep.subr.mxu0 0.0
    %164 = vmatpush1.msra.mxu0 0.0
    %165 = vmatprep.subr.mxu0 0.0
    %166 = vmatpush1.msra.mxu0 0.0
    %167 = vmatprep.subr.mxu0 0.0
    %168 = vmatpush1.msra.mxu0 0.0
    %169 = vmatprep.subr.mxu0 0.0
    %170 = vmatpush1.msra.mxu0 0.0
    %171 = vmatprep.subr.mxu0 0.0
    %172 = vmatpush1.msra.mxu0 0.0
    %173 = vmatprep.subr.mxu0 0.0
    %174 = vmatpush1.msra.mxu0 0.0
    %175 = vmatprep.subr.mxu0 0.0
    %176 = vmatpush1.msra.mxu0 0.0
    %177 = vmatprep.subr.mxu0 0.0
    %178 = vmatpush1.msra.mxu0 0.0
    %179 = vmatprep.subr.mxu0 0.0
    %180 = vmatpush1.msra.mxu0 0.0
    %181 = vmatprep.subr.mxu0 0.0
    %182 = vmatpush1.msra.mxu0 0.0
    %183 = vmatprep.subr.mxu0 0.0
    %184 = vmatpush1.msra.mxu0 0.0
    %185 = vmatprep.subr.mxu0 0.0
    %186 = vmatpush1.msra.mxu0 0.0
    %187 = vmatprep.subr.mxu0 0.0
    %188 = vmatpush1.msra.mxu0 0.0
    %189 = vmatprep.subr.mxu0 0.0
    %190 = vmatpush1.msra.mxu0 0.0
    %191 = vmatprep.subr.mxu0 0.0
    %192 = vmatpush1.msra.mxu0 0.0
    %193 = vmatprep.subr.mxu0 0.0
    %194 = vmatpush1.msra.mxu0 0.0
    %195 = vmatprep.subr.mxu0 0.0
    %196 = vmatpush1.msra.mxu0 0.0
    %197 = vmatprep.subr.mxu0 0.0
    %198 = vmatpush1.msra.mxu0 0.0
    %199 = vmatprep.subr.mxu0 0.0
    %200 = vmatpush1.msra.mxu0 0.0
    %201 = vmatprep.mubr.f32.mxu0 0.0
    %202 = vmatmul.mubr.f32.gmra.mrb[0].mxu0 %v135
    %v203 = vpop.f32.mrb[0].mxu0
    %v204 = vadd.f32 %v131, %v203
    %v205 = vpop.f32.mrb[0].mxu0
    %206 = vdwg.mxu0
    %v207 = vmul.f32 %v204, 0.5
    %v208 = vmul.f32 %v204, 0.70710677
    %v209 = verf.f32.pop %v208
    %v210 = vadd.f32 %v209, 1.0
    %v211 = vmul.f32 %v207, %v210
    %v212 = vld [vmem:[%s5] sm:$0xff]
    %v213 = vld [vmem:[%s5 + $0x8] sm:$0xff]
    %v214 = vld [vmem:[%s5 + $0x10] sm:$0xff]
    %v215 = vld [vmem:[%s5 + $0x18] sm:$0xff]
    %v216 = vld [vmem:[%s5 + $0x20] sm:$0xff]
    %v217 = vld [vmem:[%s5 + $0x28] sm:$0xff]
    %v218 = vld [vmem:[%s6] sm:$0x1]
    %v220 = vlaneseq
    %v221 = vshrl.u32 %v220, 7
    %v222 = vsub.s32 0, %v221
    %v223 = vrot.slane %v218, %v222
    %vm225 = vcmask 392192
    %v227 = vsel %vm225, %v211, 0
    %229 = vmatprep.subr.mxu0 0.0
    %230 = vmatpush1.msra.mxu0 %v212
    %231 = vmatprep.subr.mxu0 0.0
    %232 = vmatpush1.msra.mxu0 %v213
    %233 = vmatprep.subr.mxu0 0.0
    %234 = vmatpush1.msra.mxu0 %v214
    %235 = vmatprep.subr.mxu0 0.0
    %236 = vmatpush1.msra.mxu0 %v215
    %237 = vmatprep.subr.mxu0 0.0
    %238 = vmatpush1.msra.mxu0 %v216
    %239 = vmatprep.subr.mxu0 0.0
    %240 = vmatpush1.msra.mxu0 %v217
    %241 = vmatprep.subr.mxu0 0.0
    %242 = vmatpush1.msra.mxu0 0.0
    %243 = vmatprep.subr.mxu0 0.0
    %244 = vmatpush1.msra.mxu0 0.0
    %245 = vmatprep.subr.mxu0 0.0
    %246 = vmatpush1.msra.mxu0 0.0
    %247 = vmatprep.subr.mxu0 0.0
    %248 = vmatpush1.msra.mxu0 0.0
    %249 = vmatprep.subr.mxu0 0.0
    %250 = vmatpush1.msra.mxu0 0.0
    %251 = vmatprep.subr.mxu0 0.0
    %252 = vmatpush1.msra.mxu0 0.0
    %253 = vmatprep.subr.mxu0 0.0
    %254 = vmatpush1.msra.mxu0 0.0
    %255 = vmatprep.subr.mxu0 0.0
    %256 = vmatpush1.msra.mxu0 0.0
    %257 = vmatprep.subr.mxu0 0.0
    %258 = vmatpush1.msra.mxu0 0.0
    %259 = vmatprep.subr.mxu0 0.0
    %260 = vmatpush1.msra.mxu0 0.0
    %261 = vmatprep.subr.mxu0 0.0
    %262 = vmatpush1.msra.mxu0 0.0
    %263 = vmatprep.subr.mxu0 0.0
    %264 = vmatpush1.msra.mxu0 0.0
    %265 = vmatprep.subr.mxu0 0.0
    %266 = vmatpush1.msra.mxu0 0.0
    %267 = vmatprep.subr.mxu0 0.0
    %268 = vmatpush1.msra.mxu0 0.0
    %269 = vmatprep.subr.mxu0 0.0
    %270 = vmatpush1.msra.mxu0 0.0
    %271 = vmatprep.subr.mxu0 0.0
    %272 = vmatpush1.msra.mxu0 0.0
    %273 = vmatprep.subr.mxu0 0.0
    %274 = vmatpush1.msra.mxu0 0.0
    %275 = vmatprep.subr.mxu0 0.0
    %276 = vmatpush1.msra.mxu0 0.0
    %277 = vmatprep.subr.mxu0 0.0
    %278 = vmatpush1.msra.mxu0 0.0
    %279 = vmatprep.subr.mxu0 0.0
    %280 = vmatpush1.msra.mxu0 0.0
    %281 = vmatprep.subr.mxu0 0.0
    %282 = vmatpush1.msra.mxu0 0.0
    %283 = vmatprep.subr.mxu0 0.0
    %284 = vmatpush1.msra.mxu0 0.0
    %285 = vmatprep.subr.mxu0 0.0
    %286 = vmatpush1.msra.mxu0 0.0
    %287 = vmatprep.subr.mxu0 0.0
    %288 = vmatpush1.msra.mxu0 0.0
    %289 = vmatprep.subr.mxu0 0.0
    %290 = vmatpush1.msra.mxu0 0.0
    %291 = vmatprep.subr.mxu0 0.0
    %292 = vmatpush1.msra.mxu0 0.0
    %293 = vmatprep.mubr.f32.mxu0 0.0
    %294 = vmatmul.mubr.f32.gmra.mrb[0].mxu0 %v227
    %v295 = vpop.f32.mrb[0].mxu0
    %v296 = vadd.f32 %v223, %v295
    %v297 = vpop.f32.mrb[0].mxu0
    %298 = vdwg.mxu0
    %vm299 = vcmask 130048
    %300 = vst.msk [vmem:[#allocation2] sm:$0xff] %vm299, %v296
    // Predicated region
    $region30: #{mlp_encoder.1} parent=1 // pred_check
      _
    $region31: #{mlp_encoder.1} parent=1 // pred_check_branch
      %302 = sbr.rel (0) target = $region33
    $region32: #{mlp_encoder.1} parent=1 // pred_region
      %s304 = ssub.s32 128, 128
      %305 = vsyncadd [#allocation3], %s304
      %s307 = sshll.u32 [#allocation2], 4
      %s308 = int_to_ptr.vmem [resolvable:$true] %s307
      %310 = dma.vmem_to_hbm [thread:$0]  %s308, 128, %s7, [#allocation3]
    $region33: #{mlp_encoder.1} parent=1 // pred_fallthru
      _
    // Predicated region
    $region34: #{mlp_encoder.1} parent=1 // pred_check
      _
    $region35: #{mlp_encoder.1} parent=1 // pred_check_branch
      %312 = sbr.rel (0) target = $region37
    $region36: #{mlp_encoder.1} parent=1 // pred_region
      %313 = dma.done [#allocation3], 128
    $region37: #{mlp_encoder.1} parent=1 // pred_fallthru
      _
    %314 = vsyncpa [#allocation3], 1

</llo_original>
